<compile_context>
chip_gen: v7x
topology: tpu7x:2x2x1
jax: 0.10.0
libtpu: 0.0.40
codegen_flags: <defaults>
</compile_context>

<pallas_src>
import functools

import jax
import jax.numpy as jnp
from jax import lax
from jax.experimental import pallas as pl
from jax.experimental.pallas import tpu as pltpu


# ---------------------------------------------------------------------------
# Pallas kernel: fused (im2col-matmul conv) + relu + three 1x1 convs + final 1x1
# Everything is channel-on-sublane / pixel-on-lane: h = W @ h_prev.
# ---------------------------------------------------------------------------
def _veryflatnet_kernel(center_idx,
                        p_ref, wf_ref, bf_ref,
                        w0x_ref, w0y_ref, b0_ref,
                        w1_ref, b1_ref,
                        w2_ref, b2_ref,
                        wp_ref, bp_ref,
                        o_ref):
    p = p_ref[...]                                                # (KK, TM) bf16

    # convfeatures: y = Wf @ patches + bf   (9x9 conv as im2col matmul, f32 acc)
    y = jnp.dot(wf_ref[...], p, preferred_element_type=jnp.float32) + bf_ref[...]
    y = jnp.maximum(y, 0.0)                                       # relu(y), (C, TM) f32

    # relu(cat(x, y)) then convp0  ==  W0[:,0]*relu(x) + W0[:,1:]@relu(y) + b0
    xc = jnp.maximum(p[center_idx:center_idx + 1, :].astype(jnp.float32), 0.0)  # (1, TM)
    h = (w0x_ref[...] * xc                                        # (C0,1)*(1,TM)
         + jnp.dot(w0y_ref[...], y.astype(jnp.bfloat16),
                   preferred_element_type=jnp.float32)
         + b0_ref[...])
    h = jnp.maximum(h, 0.0)                                       # relu(convp0)

    # Tiny tail of the chain (few % of the MXU FLOPs) kept in f32 for accuracy.
    h = jnp.maximum(
        jnp.dot(w1_ref[...], h, preferred_element_type=jnp.float32) + b1_ref[...], 0.0)
    h = jnp.maximum(
        jnp.dot(w2_ref[...], h, preferred_element_type=jnp.float32) + b2_ref[...], 0.0)

    # convpf (no relu): lane-dense (1, TM) output row.
    o_ref[...] = (jnp.dot(wp_ref[...], h, preferred_element_type=jnp.float32)
                  + bp_ref[...])


# ---------------------------------------------------------------------------
# Wrapper: layout conversion (NCHW -> (81, M)), weight reshaping, pallas_call
# ---------------------------------------------------------------------------
def veryflatnet_forward(x, params, *, kernel_size, tm=8192,
                        patch_dtype=jnp.bfloat16):
    N, Cin, H, W = x.shape
    assert Cin == 1, "VeryFlatNet expects a single input channel"
    K = kernel_size
    pad = (K - 1) // 2
    KK = K * K
    center_idx = pad * K + pad              # tap index holding the original x

    # ---- pixel-tile sizing: pixels live on lanes -> tm must be a multiple of
    # 128; prefer >= 2 grid steps so both v7x TensorCores are fed. ------------
    M = N * H * W
    Mp128 = 128 * pl.cdiv(M, 128)
    tm = max(128, 128 * (tm // 128))
    if Mp128 <= 256:
        tm = Mp128                          # too small to split usefully
    else:
        tm = min(tm, 128 * pl.cdiv(Mp128 // 2, 128))   # at least 2 grid steps
    Mp = tm * pl.cdiv(M, tm)                # lane-pad M so any N,H,W works
    n_tiles = Mp // tm

    # ---- im2col (glue): (N,1,H,W) -> (KK, Mp) bf16, taps on sublanes --------
    xs = x[:, 0].astype(jnp.float32)                               # (N, H, W)
    xp = jnp.pad(xs, ((0, 0), (pad, pad), (pad, pad)))
    taps = [xp[:, dy:dy + H, dx:dx + W].reshape(M)
            for dy in range(K) for dx in range(K)]
    patches = jnp.stack(taps, axis=0)                              # (KK, M)
    if Mp > M:
        patches = jnp.pad(patches, ((0, 0), (0, Mp - M)))
    patches = patches.astype(patch_dtype)

    # ---- reshape PyTorch-convention weights into left-multiply form ----------
    C = params["wf"].shape[0]
    Wf = params["wf"].reshape(C, KK).astype(patch_dtype)            # (C, KK) bf16
    bf = params["bf"].reshape(C, 1).astype(jnp.float32)

    W0 = params["w0"][:, :, 0, 0]                                   # (C0, 1+C)
    W0x = W0[:, 0:1].astype(jnp.float32)                            # (C0, 1)
    W0y = W0[:, 1:].astype(jnp.bfloat16)                            # (C0, C)
    b0 = params["b0"].reshape(-1, 1).astype(jnp.float32)
    W1 = params["w1"][:, :, 0, 0].astype(jnp.float32)               # (C1, C0)
    b1 = params["b1"].reshape(-1, 1).astype(jnp.float32)
    W2 = params["w2"][:, :, 0, 0].astype(jnp.float32)               # (C2, C1)
    b2 = params["b2"].reshape(-1, 1).astype(jnp.float32)
    Wp = params["wp"][:, :, 0, 0].astype(jnp.float32)               # (1, C2)
    bp = params["bp"].reshape(1, 1).astype(jnp.float32)

    def full_spec(a):
        nd = a.ndim
        return pl.BlockSpec(a.shape, lambda i, _nd=nd: (0,) * _nd)

    out = pl.pallas_call(
        functools.partial(_veryflatnet_kernel, center_idx),
        out_shape=jax.ShapeDtypeStruct((1, Mp), jnp.float32),
        grid_spec=pltpu.PrefetchScalarGridSpec(
            num_scalar_prefetch=0,
            grid=(n_tiles,),
            in_specs=[
                # patch stream: taps on sublanes (full 81 extent), big lane tile.
                pl.BlockSpec((KK, tm), lambda i: (0, i)),
                full_spec(Wf), full_spec(bf),
                full_spec(W0x), full_spec(W0y), full_spec(b0),
                full_spec(W1), full_spec(b1),
                full_spec(W2), full_spec(b2),
                full_spec(Wp), full_spec(bp),
            ],
            # lane-dense (1, tm) output row per grid step.
            out_specs=pl.BlockSpec((1, tm), lambda i: (0, i)),
        ),
        compiler_params=pltpu.CompilerParams(
            dimension_semantics=("parallel",),
            vmem_limit_bytes=48 * 1024 * 1024),
    )(patches, Wf, bf, W0x, W0y, b0, W1, b1, W2, b2, Wp, bp)

    # back to NCHW
    flat = out[0, :M]
    return flat.reshape(N, H, W)[:, None, :, :]


# ---------------------------------------------------------------------------
# Deterministic parameter init (PyTorch weight shapes; synthetic values)
# ---------------------------------------------------------------------------
def init_params(key, num_channels, kernel_size):
    C, K = num_channels, kernel_size
    ch = 1 + C
    ks = jax.random.split(key, 10)

    def u(k, shape, fan_in):
        bound = 1.0 / jnp.sqrt(float(fan_in))
        return jax.random.uniform(k, shape, jnp.float32, -bound, bound)

    return dict(
        wf=u(ks[0], (C, 1, K, K), K * K), bf=u(ks[1], (C,), K * K),
        w0=u(ks[2], (ch // 2, ch, 1, 1), ch), b0=u(ks[3], (ch // 2,), ch),
        w1=u(ks[4], (ch // 4, ch // 2, 1, 1), ch // 2), b1=u(ks[5], (ch // 4,), ch // 2),
        w2=u(ks[6], (ch // 8, ch // 4, 1, 1), ch // 4), b2=u(ks[7], (ch // 8,), ch // 4),
        wp=u(ks[8], (1, ch // 8, 1, 1), ch // 8), bp=u(ks[9], (1,), ch // 8),
    )


# ---------------------------------------------------------------------------
# Pure-JAX reference (matches the PyTorch forward exactly) for verification
# ---------------------------------------------------------------------------
def reference_forward(x, params, *, kernel_size):
    dn = ("NCHW", "OIHW", "NCHW")
    pad = (kernel_size - 1) // 2

    def conv(t, w, b, p):
        y = lax.conv_general_dilated(t, w, (1, 1), [(p, p), (p, p)],
                                     dimension_numbers=dn)
        return y + b.reshape(1, -1, 1, 1)

    y = conv(x, params["wf"], params["bf"], pad)
    f = jax.nn.relu(jnp.concatenate([x, y], axis=1))
    f = jax.nn.relu(conv(f, params["w0"], params["b0"], 0))
    f = jax.nn.relu(conv(f, params["w1"], params["b1"], 0))
    f = jax.nn.relu(conv(f, params["w2"], params["b2"], 0))
    return conv(f, params["wp"], params["bp"], 0)


if __name__ == "__main__":
    NUM_CHANNELS = 32      # small config (module default is 128)
    KERNEL_SIZE = 9        # module default

    key = jax.random.PRNGKey(0)
    kx, kp = jax.random.split(key)
    x = jax.random.normal(kx, (2, 1, 16, 16), dtype=jnp.float32)
    params = init_params(kp, NUM_CHANNELS, KERNEL_SIZE)

    out = veryflatnet_forward(x, params, kernel_size=KERNEL_SIZE)
    out = jax.block_until_ready(out)

    ref = jax.block_until_ready(reference_forward(x, params, kernel_size=KERNEL_SIZE))
    assert out.shape == (2, 1, 16, 16)
    # bf16 patches / conv weight / W0y dot (f32 MXU accumulation) vs. a pure
    # f32 reference -> relaxed tolerance (observed error is O(1e-3)).
    assert jnp.allclose(out, ref, atol=2e-2, rtol=2e-2), "mismatch vs reference"

    print("KERNEL_OK")
</pallas_src>

<mosaic_0001>
module attributes {stable_mosaic.version = 11 : i64} {
  func.func @_veryflatnet_kernel(%arg0: i32, %arg1: memref<81x256xbf16, #tpu.memory_space<vmem>>, %arg2: memref<32x81xbf16, #tpu.memory_space<vmem>>, %arg3: memref<32x1xf32, #tpu.memory_space<vmem>>, %arg4: memref<16x1xf32, #tpu.memory_space<vmem>>, %arg5: memref<16x32xbf16, #tpu.memory_space<vmem>>, %arg6: memref<16x1xf32, #tpu.memory_space<vmem>>, %arg7: memref<8x16xf32, #tpu.memory_space<vmem>>, %arg8: memref<8x1xf32, #tpu.memory_space<vmem>>, %arg9: memref<4x8xf32, #tpu.memory_space<vmem>>, %arg10: memref<4x1xf32, #tpu.memory_space<vmem>>, %arg11: memref<1x4xf32, #tpu.memory_space<vmem>>, %arg12: memref<1x1xf32, #tpu.memory_space<vmem>>, %arg13: memref<1x256xf32, #tpu.memory_space<vmem>>) attributes {dimension_semantics = [#tpu.dimension_semantics<parallel>], iteration_bounds = array<i64: 2>, scalar_prefetch = 0 : i64, scratch_operands = 0 : i64, tpu.core_type = #tpu.core_type<tc>, window_params = [{transform_indices = @transform_0, window_bounds = array<i64: 81, 256>}, {pipeline_mode = #tpu.pipeline_mode<synchronous>, transform_indices = @transform_1, window_bounds = array<i64: 32, 81>}, {pipeline_mode = #tpu.pipeline_mode<synchronous>, transform_indices = @transform_2, window_bounds = array<i64: 32, 1>}, {pipeline_mode = #tpu.pipeline_mode<synchronous>, transform_indices = @transform_3, window_bounds = array<i64: 16, 1>}, {pipeline_mode = #tpu.pipeline_mode<synchronous>, transform_indices = @transform_4, window_bounds = array<i64: 16, 32>}, {pipeline_mode = #tpu.pipeline_mode<synchronous>, transform_indices = @transform_5, window_bounds = array<i64: 16, 1>}, {pipeline_mode = #tpu.pipeline_mode<synchronous>, transform_indices = @transform_6, window_bounds = array<i64: 8, 16>}, {pipeline_mode = #tpu.pipeline_mode<synchronous>, transform_indices = @transform_7, window_bounds = array<i64: 8, 1>}, {pipeline_mode = #tpu.pipeline_mode<synchronous>, transform_indices = @transform_8, window_bounds = array<i64: 4, 8>}, {pipeline_mode = #tpu.pipeline_mode<synchronous>, transform_indices = @transform_9, window_bounds = array<i64: 4, 1>}, {pipeline_mode = #tpu.pipeline_mode<synchronous>, transform_indices = @transform_10, window_bounds = array<i64: 1, 4>}, {pipeline_mode = #tpu.pipeline_mode<synchronous>, transform_indices = @transform_11, window_bounds = array<i64: 1, 1>}, {transform_indices = @transform_12, window_bounds = array<i64: 1, 256>}]} {
    %c0 = arith.constant 0 : index
    %c0_0 = arith.constant 0 : index
    %0 = vector.load %arg1[%c0, %c0_0] : memref<81x256xbf16, #tpu.memory_space<vmem>>, vector<81x256xbf16>
    %c0_1 = arith.constant 0 : index
    %c0_2 = arith.constant 0 : index
    %1 = vector.load %arg2[%c0_1, %c0_2] : memref<32x81xbf16, #tpu.memory_space<vmem>>, vector<32x81xbf16>
    %cst = arith.constant dense<0.000000e+00> : vector<32x256xf32>
    %2 = tpu.matmul %1, %0, %cst {dimension_numbers = #tpu.dot_dimension_numbers<[1], [0], [0], [1], [0, 0, 1, 1], [], []>} : vector<32x81xbf16>, vector<81x256xbf16>, vector<32x256xf32> -> vector<32x256xf32>
    %c0_3 = arith.constant 0 : index
    %c0_4 = arith.constant 0 : index
    %3 = vector.load %arg3[%c0_3, %c0_4] : memref<32x1xf32, #tpu.memory_space<vmem>>, vector<32x1xf32>
    %4 = vector.broadcast %3 : vector<32x1xf32> to vector<32x256xf32>
    %5 = arith.addf %2, %4 : vector<32x256xf32>
    %cst_5 = arith.constant 0.000000e+00 : f32
    %6 = vector.broadcast %cst_5 : f32 to vector<32x256xf32>
    %7 = arith.maximumf %5, %6 : vector<32x256xf32>
    %8 = vector.extract_strided_slice %0 {offsets = [40, 0], sizes = [1, 256], strides = [1, 1]} : vector<81x256xbf16> to vector<1x256xbf16>
    %9 = arith.extf %8 : vector<1x256xbf16> to vector<1x256xf32>
    %cst_6 = arith.constant 0.000000e+00 : f32
    %10 = vector.broadcast %cst_6 : f32 to vector<1x256xf32>
    %11 = arith.maximumf %9, %10 : vector<1x256xf32>
    %c0_7 = arith.constant 0 : index
    %c0_8 = arith.constant 0 : index
    %12 = vector.load %arg4[%c0_7, %c0_8] : memref<16x1xf32, #tpu.memory_space<vmem>>, vector<16x1xf32>
    %13 = vector.broadcast %12 : vector<16x1xf32> to vector<16x256xf32>
    %14 = vector.broadcast %11 : vector<1x256xf32> to vector<16x256xf32>
    %15 = arith.mulf %13, %14 : vector<16x256xf32>
    %c0_9 = arith.constant 0 : index
    %c0_10 = arith.constant 0 : index
    %16 = vector.load %arg5[%c0_9, %c0_10] : memref<16x32xbf16, #tpu.memory_space<vmem>>, vector<16x32xbf16>
    %17 = arith.truncf %7 : vector<32x256xf32> to vector<32x256xbf16>
    %cst_11 = arith.constant dense<0.000000e+00> : vector<16x256xf32>
    %18 = tpu.matmul %16, %17, %cst_11 {dimension_numbers = #tpu.dot_dimension_numbers<[1], [0], [0], [1], [0, 0, 1, 1], [], []>} : vector<16x32xbf16>, vector<32x256xbf16>, vector<16x256xf32> -> vector<16x256xf32>
    %19 = arith.addf %15, %18 : vector<16x256xf32>
    %c0_12 = arith.constant 0 : index
    %c0_13 = arith.constant 0 : index
    %20 = vector.load %arg6[%c0_12, %c0_13] : memref<16x1xf32, #tpu.memory_space<vmem>>, vector<16x1xf32>
    %21 = vector.broadcast %20 : vector<16x1xf32> to vector<16x256xf32>
    %22 = arith.addf %19, %21 : vector<16x256xf32>
    %cst_14 = arith.constant 0.000000e+00 : f32
    %23 = vector.broadcast %cst_14 : f32 to vector<16x256xf32>
    %24 = arith.maximumf %22, %23 : vector<16x256xf32>
    %c0_15 = arith.constant 0 : index
    %c0_16 = arith.constant 0 : index
    %25 = vector.load %arg7[%c0_15, %c0_16] : memref<8x16xf32, #tpu.memory_space<vmem>>, vector<8x16xf32>
    %cst_17 = arith.constant dense<0.000000e+00> : vector<8x256xf32>
    %26 = tpu.matmul %25, %24, %cst_17 {dimension_numbers = #tpu.dot_dimension_numbers<[1], [0], [0], [1], [0, 0, 1, 1], [], []>} : vector<8x16xf32>, vector<16x256xf32>, vector<8x256xf32> -> vector<8x256xf32>
    %c0_18 = arith.constant 0 : index
    %c0_19 = arith.constant 0 : index
    %27 = vector.load %arg8[%c0_18, %c0_19] : memref<8x1xf32, #tpu.memory_space<vmem>>, vector<8x1xf32>
    %28 = vector.broadcast %27 : vector<8x1xf32> to vector<8x256xf32>
    %29 = arith.addf %26, %28 : vector<8x256xf32>
    %cst_20 = arith.constant 0.000000e+00 : f32
    %30 = vector.broadcast %cst_20 : f32 to vector<8x256xf32>
    %31 = arith.maximumf %29, %30 : vector<8x256xf32>
    %c0_21 = arith.constant 0 : index
    %c0_22 = arith.constant 0 : index
    %32 = vector.load %arg9[%c0_21, %c0_22] : memref<4x8xf32, #tpu.memory_space<vmem>>, vector<4x8xf32>
    %cst_23 = arith.constant dense<0.000000e+00> : vector<4x256xf32>
    %33 = tpu.matmul %32, %31, %cst_23 {dimension_numbers = #tpu.dot_dimension_numbers<[1], [0], [0], [1], [0, 0, 1, 1], [], []>} : vector<4x8xf32>, vector<8x256xf32>, vector<4x256xf32> -> vector<4x256xf32>
    %c0_24 = arith.constant 0 : index
    %c0_25 = arith.constant 0 : index
    %34 = vector.load %arg10[%c0_24, %c0_25] : memref<4x1xf32, #tpu.memory_space<vmem>>, vector<4x1xf32>
    %35 = vector.broadcast %34 : vector<4x1xf32> to vector<4x256xf32>
    %36 = arith.addf %33, %35 : vector<4x256xf32>
    %cst_26 = arith.constant 0.000000e+00 : f32
    %37 = vector.broadcast %cst_26 : f32 to vector<4x256xf32>
    %38 = arith.maximumf %36, %37 : vector<4x256xf32>
    %c0_27 = arith.constant 0 : index
    %c0_28 = arith.constant 0 : index
    %39 = vector.load %arg11[%c0_27, %c0_28] : memref<1x4xf32, #tpu.memory_space<vmem>>, vector<1x4xf32>
    %cst_29 = arith.constant dense<0.000000e+00> : vector<1x256xf32>
    %40 = tpu.matmul %39, %38, %cst_29 {dimension_numbers = #tpu.dot_dimension_numbers<[1], [0], [0], [1], [0, 0, 1, 1], [], []>} : vector<1x4xf32>, vector<4x256xf32>, vector<1x256xf32> -> vector<1x256xf32>
    %c0_30 = arith.constant 0 : index
    %c0_31 = arith.constant 0 : index
    %41 = vector.load %arg12[%c0_30, %c0_31] : memref<1x1xf32, #tpu.memory_space<vmem>>, vector<1x1xf32>
    %42 = vector.broadcast %41 : vector<1x1xf32> to vector<1x256xf32>
    %43 = arith.addf %40, %42 : vector<1x256xf32>
    %c0_32 = arith.constant 0 : index
    %c0_33 = arith.constant 0 : index
    %44 = vector.load %arg13[%c0_32, %c0_33] : memref<1x256xf32, #tpu.memory_space<vmem>>, vector<1x256xf32>
    tpu.vector_store %arg13[%c0_32, %c0_33], %43 {strides = array<i32>} : memref<1x256xf32, #tpu.memory_space<vmem>>, vector<1x256xf32>,
    return
  }
  func.func @transform_0(%arg0: i32) -> (i32, i32) {
    %c0_i32 = arith.constant 0 : i32
    %c0_i32_0 = arith.constant 0 : i32
    return %c0_i32, %arg0 : i32, i32
  }
  func.func @transform_1(%arg0: i32) -> (i32, i32) {
    %c0_i32 = arith.constant 0 : i32
    %c0_i32_0 = arith.constant 0 : i32
    %c0_i32_1 = arith.constant 0 : i32
    return %c0_i32, %c0_i32_0 : i32, i32
  }
  func.func @transform_2(%arg0: i32) -> (i32, i32) {
    %c0_i32 = arith.constant 0 : i32
    %c0_i32_0 = arith.constant 0 : i32
    %c0_i32_1 = arith.constant 0 : i32
    return %c0_i32, %c0_i32_0 : i32, i32
  }
  func.func @transform_3(%arg0: i32) -> (i32, i32) {
    %c0_i32 = arith.constant 0 : i32
    %c0_i32_0 = arith.constant 0 : i32
    %c0_i32_1 = arith.constant 0 : i32
    return %c0_i32, %c0_i32_0 : i32, i32
  }
  func.func @transform_4(%arg0: i32) -> (i32, i32) {
    %c0_i32 = arith.constant 0 : i32
    %c0_i32_0 = arith.constant 0 : i32
    %c0_i32_1 = arith.constant 0 : i32
    return %c0_i32, %c0_i32_0 : i32, i32
  }
  func.func @transform_5(%arg0: i32) -> (i32, i32) {
    %c0_i32 = arith.constant 0 : i32
    %c0_i32_0 = arith.constant 0 : i32
    %c0_i32_1 = arith.constant 0 : i32
    return %c0_i32, %c0_i32_0 : i32, i32
  }
  func.func @transform_6(%arg0: i32) -> (i32, i32) {
    %c0_i32 = arith.constant 0 : i32
    %c0_i32_0 = arith.constant 0 : i32
    %c0_i32_1 = arith.constant 0 : i32
    return %c0_i32, %c0_i32_0 : i32, i32
  }
  func.func @transform_7(%arg0: i32) -> (i32, i32) {
    %c0_i32 = arith.constant 0 : i32
    %c0_i32_0 = arith.constant 0 : i32
    %c0_i32_1 = arith.constant 0 : i32
    return %c0_i32, %c0_i32_0 : i32, i32
  }
  func.func @transform_8(%arg0: i32) -> (i32, i32) {
    %c0_i32 = arith.constant 0 : i32
    %c0_i32_0 = arith.constant 0 : i32
    %c0_i32_1 = arith.constant 0 : i32
    return %c0_i32, %c0_i32_0 : i32, i32
  }
  func.func @transform_9(%arg0: i32) -> (i32, i32) {
    %c0_i32 = arith.constant 0 : i32
    %c0_i32_0 = arith.constant 0 : i32
    %c0_i32_1 = arith.constant 0 : i32
    return %c0_i32, %c0_i32_0 : i32, i32
  }
  func.func @transform_10(%arg0: i32) -> (i32, i32) {
    %c0_i32 = arith.constant 0 : i32
    %c0_i32_0 = arith.constant 0 : i32
    %c0_i32_1 = arith.constant 0 : i32
    return %c0_i32, %c0_i32_0 : i32, i32
  }
  func.func @transform_11(%arg0: i32) -> (i32, i32) {
    %c0_i32 = arith.constant 0 : i32
    %c0_i32_0 = arith.constant 0 : i32
    %c0_i32_1 = arith.constant 0 : i32
    return %c0_i32, %c0_i32_0 : i32, i32
  }
  func.func @transform_12(%arg0: i32) -> (i32, i32) {
    %c0_i32 = arith.constant 0 : i32
    %c0_i32_0 = arith.constant 0 : i32
    return %c0_i32, %arg0 : i32, i32
  }
}

</mosaic_0001>

<llo_original>
// kernel: tpu_custom_call.1
$region0: #{tpu_custom_call.1}
  #allocation0 [shape = 'u32[]', space=smem, size = 0x4, offset = 0x4, fixed_abs, tag = 'smem constant byte address 0x4 - core index']
  #allocation1 [shape = 'u32[144,128]{1,0:T(1,128)}', space=vmem, size = 0x12000, scoped, tag = 'internal scratch']
  #allocation2 [shape = 'f32[1,1]{1,0:T(1,128)S(1)}', space=vmem, size = 0x200, scoped, tag = 'scoped memory for tpu_custom_call.1']
  %s0 = inlined_call_operand.hbm [shape: bf16[81,512], index: 0, kind: input, shape index: {}]
  %s1 = inlined_call_operand.vmem [shape: bf16[32,81], index: 1, kind: input, shape index: {}]
  %s2 = inlined_call_operand.vmem [shape: f32[32,1], index: 2, kind: input, shape index: {}]
  %s3 = inlined_call_operand.vmem [shape: f32[16,1], index: 3, kind: input, shape index: {}]
  %s4 = inlined_call_operand.vmem [shape: bf16[16,32], index: 4, kind: input, shape index: {}]
  %s5 = inlined_call_operand.vmem [shape: f32[16,1], index: 5, kind: input, shape index: {}]
  %s6 = inlined_call_operand.vmem [shape: f32[8,16], index: 6, kind: input, shape index: {}]
  %s7 = inlined_call_operand.vmem [shape: f32[8,1], index: 7, kind: input, shape index: {}]
  %s8 = inlined_call_operand.vmem [shape: f32[4,8], index: 8, kind: input, shape index: {}]
  %s9 = inlined_call_operand.vmem [shape: f32[4,1], index: 9, kind: input, shape index: {}]
  %s10 = inlined_call_operand.vmem [shape: f32[1,4], index: 10, kind: input, shape index: {}]
  %s11 = inlined_call_operand.<no memory space> [shape: f32[1,1], index: 11, kind: input, shape index: {}]
  %s12 = inlined_call_operand.hbm [shape: f32[1,512], index: 12, kind: output, shape index: {}]
  %s13 = sld [smem:[#allocation0]]
  $region85: #{tpu_custom_call.1} parent=0
    _
  %s15 = ssub.s32 1, %s13
  %s16 = scalar_select 0, %s15, %s13
  %v17 = vstv %s11
  %18 = vst [vmem:[#allocation2] sm:$0x1] %v17
  $region1: #{tpu_custom_call.1} parent=0
    #allocation3 [shape = 'u8[90112]{0}', space=vmem, size = 0x16000, scoped, tag = 'input window, operand 0']
    #allocation4 [shape = 's32[2]{0}', space=sflag, size = 0x8, scoped, tag = 'scoped memory for tpu_custom_call.1']
    #allocation5 [shape = 's32[2]{0}', space=sflag, size = 0x8, scoped, tag = 'scoped memory for tpu_custom_call.1']
    #allocation6 [shape = 'u8[2048]{0}', space=vmem, size = 0x800, scoped, tag = 'output window, operand 0']
    %19 = vsyncpa [#allocation4], 0
    %s20 = scalar_lea.sflag [#allocation4], 1
    %21 = vsyncpa %s20, 0
    %22 = vsyncpa [#allocation5], 0
    %s23 = scalar_lea.sflag [#allocation5], 1
    %24 = vsyncpa %s23, 0
    loop: start=0, step=1, limit=4
    $region2: #{tpu_custom_call.1} parent=1 // loop_pre_header
      _
    $region3: #{tpu_custom_call.1} parent=1 // loop_header
      %s26 = sphi 0, %s30
      %p27 = scmp.ge.s32.totalorder %s26, 4
      %s36 = sphi 0, %s38
      %s39 = sphi 0, %s36
      %s40 = sphi 0, %s39
      %s56 = sphi 0, %s40
      %s60 = sphi 0, %s60
      %s62 = sphi 0, %s60
      %s63 = sphi 0, %s62
      %s77 = sphi 0, %s63
      %s81 = sphi 0, %s81
      %s83 = sphi 0, %s81
      %s84 = sphi 0, %s83
      %s98 = sphi 0, %s84
      %s102 = sphi 0, %s102
      %s104 = sphi 0, %s102
      %s105 = sphi 0, %s104
      %s119 = sphi 0, %s105
      %s123 = sphi 0, %s123
      %s125 = sphi 0, %s123
      %s126 = sphi 0, %s125
      %s140 = sphi 0, %s126
      %s144 = sphi 0, %s144
      %s146 = sphi 0, %s144
      %s147 = sphi 0, %s146
      %s161 = sphi 0, %s147
      %s165 = sphi 0, %s165
      %s167 = sphi 0, %s165
      %s168 = sphi 0, %s167
      %s182 = sphi 0, %s168
      %s186 = sphi 0, %s186
      %s188 = sphi 0, %s186
      %s189 = sphi 0, %s188
      %s203 = sphi 0, %s189
      %s207 = sphi 0, %s207
      %s209 = sphi 0, %s207
      %s210 = sphi 0, %s209
      %s224 = sphi 0, %s210
      %s228 = sphi 0, %s228
      %s230 = sphi 0, %s228
      %s231 = sphi 0, %s230
      %s245 = sphi 0, %s231
      %s249 = sphi 0, %s249
      %s251 = sphi 0, %s249
      %s252 = sphi 0, %s251
      %s266 = sphi 0, %s252
      %s270 = sphi 0, %s270
      %s272 = sphi 0, %s270
      %s273 = sphi 0, %s272
      %s287 = sphi 0, %s273
      %s293 = sphi 0, %s295
      %s296 = sphi 0, %s293
      %s297 = sphi 0, %s296
      %s313 = sphi 0, %s297
    $region4: #{tpu_custom_call.1} parent=1 // loop_header_branch
      %29 = sbr.rel (%p27) target = $region8
    $region5: #{tpu_custom_call.1} parent=1 // loop_body
      %s31 = ssub.s32 %s26, 1
      %s32 = ssub.s32 %s26, 2
      %s33 = sadd.s32 %s26, 1
      %s34 = ssub.s32 %s26, %s33
      %p35 = scmp.eq.s32.totalorder %s34, 0
      %s37 = sadd.s32 %s36, 1
      %s38 = scalar_select %p35, %s36, %s37
      %p41 = pneg %p35
      %p42 = scmp.eq.s32.totalorder %s26, 1
      %p43 = por %p41, %p42
      %p44 = scmp.ne.s32.totalorder %s36, %s39
      %p45 = scmp.eq.s32.totalorder %s26, 0
      %p46 = por %p44, %p45
      %p47 = scmp.ne.s32.totalorder %s36, %s39
      %p48 = scmp.eq.s32.totalorder %s31, 1
      %p49 = por %p47, %p48
      %p50 = scmp.ne.s32.totalorder %s39, %s40
      %p51 = scmp.eq.s32.totalorder %s31, 0
      %p52 = por %p50, %p51
      %p53 = scmp.ne.s32.totalorder %s39, %s40
      %p54 = scmp.eq.s32.totalorder %s32, 1
      %p55 = por %p53, %p54
      %p57 = scmp.ne.s32.totalorder %s40, %s56
      %p58 = scmp.eq.s32.totalorder %s32, 0
      %p59 = por %p57, %p58
      %s61 = sadd.s32 %s60, 1
      %p64 = scmp.eq.s32.totalorder %s26, 1
      %p65 = scmp.ne.s32.totalorder %s60, %s62
      %p66 = scmp.eq.s32.totalorder %s26, 0
      %p67 = por %p65, %p66
      %p68 = scmp.ne.s32.totalorder %s60, %s62
      %p69 = scmp.eq.s32.totalorder %s31, 1
      %p70 = por %p68, %p69
      %p71 = scmp.ne.s32.totalorder %s62, %s63
      %p72 = scmp.eq.s32.totalorder %s31, 0
      %p73 = por %p71, %p72
      %p74 = scmp.ne.s32.totalorder %s62, %s63
      %p75 = scmp.eq.s32.totalorder %s32, 1
      %p76 = por %p74, %p75
      %p78 = scmp.ne.s32.totalorder %s63, %s77
      %p79 = scmp.eq.s32.totalorder %s32, 0
      %p80 = por %p78, %p79
      %s82 = sadd.s32 %s81, 1
      %p85 = scmp.eq.s32.totalorder %s26, 1
      %p86 = scmp.ne.s32.totalorder %s81, %s83
      %p87 = scmp.eq.s32.totalorder %s26, 0
      %p88 = por %p86, %p87
      %p89 = scmp.ne.s32.totalorder %s81, %s83
      %p90 = scmp.eq.s32.totalorder %s31, 1
      %p91 = por %p89, %p90
      %p92 = scmp.ne.s32.totalorder %s83, %s84
      %p93 = scmp.eq.s32.totalorder %s31, 0
      %p94 = por %p92, %p93
      %p95 = scmp.ne.s32.totalorder %s83, %s84
      %p96 = scmp.eq.s32.totalorder %s32, 1
      %p97 = por %p95, %p96
      %p99 = scmp.ne.s32.totalorder %s84, %s98
      %p100 = scmp.eq.s32.totalorder %s32, 0
      %p101 = por %p99, %p100
      %s103 = sadd.s32 %s102, 1
      %p106 = scmp.eq.s32.totalorder %s26, 1
      %p107 = scmp.ne.s32.totalorder %s102, %s104
      %p108 = scmp.eq.s32.totalorder %s26, 0
      %p109 = por %p107, %p108
      %p110 = scmp.ne.s32.totalorder %s102, %s104
      %p111 = scmp.eq.s32.totalorder %s31, 1
      %p112 = por %p110, %p111
      %p113 = scmp.ne.s32.totalorder %s104, %s105
      %p114 = scmp.eq.s32.totalorder %s31, 0
      %p115 = por %p113, %p114
      %p116 = scmp.ne.s32.totalorder %s104, %s105
      %p117 = scmp.eq.s32.totalorder %s32, 1
      %p118 = por %p116, %p117
      %p120 = scmp.ne.s32.totalorder %s105, %s119
      %p121 = scmp.eq.s32.totalorder %s32, 0
      %p122 = por %p120, %p121
      %s124 = sadd.s32 %s123, 1
      %p127 = scmp.eq.s32.totalorder %s26, 1
      %p128 = scmp.ne.s32.totalorder %s123, %s125
      %p129 = scmp.eq.s32.totalorder %s26, 0
      %p130 = por %p128, %p129
      %p131 = scmp.ne.s32.totalorder %s123, %s125
      %p132 = scmp.eq.s32.totalorder %s31, 1
      %p133 = por %p131, %p132
      %p134 = scmp.ne.s32.totalorder %s125, %s126
      %p135 = scmp.eq.s32.totalorder %s31, 0
      %p136 = por %p134, %p135
      %p137 = scmp.ne.s32.totalorder %s125, %s126
      %p138 = scmp.eq.s32.totalorder %s32, 1
      %p139 = por %p137, %p138
      %p141 = scmp.ne.s32.totalorder %s126, %s140
      %p142 = scmp.eq.s32.totalorder %s32, 0
      %p143 = por %p141, %p142
      %s145 = sadd.s32 %s144, 1
      %p148 = scmp.eq.s32.totalorder %s26, 1
      %p149 = scmp.ne.s32.totalorder %s144, %s146
      %p150 = scmp.eq.s32.totalorder %s26, 0
      %p151 = por %p149, %p150
      %p152 = scmp.ne.s32.totalorder %s144, %s146
      %p153 = scmp.eq.s32.totalorder %s31, 1
      %p154 = por %p152, %p153
      %p155 = scmp.ne.s32.totalorder %s146, %s147
      %p156 = scmp.eq.s32.totalorder %s31, 0
      %p157 = por %p155, %p156
      %p158 = scmp.ne.s32.totalorder %s146, %s147
      %p159 = scmp.eq.s32.totalorder %s32, 1
      %p160 = por %p158, %p159
      %p162 = scmp.ne.s32.totalorder %s147, %s161
      %p163 = scmp.eq.s32.totalorder %s32, 0
      %p164 = por %p162, %p163
      %s166 = sadd.s32 %s165, 1
      %p169 = scmp.eq.s32.totalorder %s26, 1
      %p170 = scmp.ne.s32.totalorder %s165, %s167
      %p171 = scmp.eq.s32.totalorder %s26, 0
      %p172 = por %p170, %p171
      %p173 = scmp.ne.s32.totalorder %s165, %s167
      %p174 = scmp.eq.s32.totalorder %s31, 1
      %p175 = por %p173, %p174
      %p176 = scmp.ne.s32.totalorder %s167, %s168
      %p177 = scmp.eq.s32.totalorder %s31, 0
      %p178 = por %p176, %p177
      %p179 = scmp.ne.s32.totalorder %s167, %s168
      %p180 = scmp.eq.s32.totalorder %s32, 1
      %p181 = por %p179, %p180
      %p183 = scmp.ne.s32.totalorder %s168, %s182
      %p184 = scmp.eq.s32.totalorder %s32, 0
      %p185 = por %p183, %p184
      %s187 = sadd.s32 %s186, 1
      %p190 = scmp.eq.s32.totalorder %s26, 1
      %p191 = scmp.ne.s32.totalorder %s186, %s188
      %p192 = scmp.eq.s32.totalorder %s26, 0
      %p193 = por %p191, %p192
      %p194 = scmp.ne.s32.totalorder %s186, %s188
      %p195 = scmp.eq.s32.totalorder %s31, 1
      %p196 = por %p194, %p195
      %p197 = scmp.ne.s32.totalorder %s188, %s189
      %p198 = scmp.eq.s32.totalorder %s31, 0
      %p199 = por %p197, %p198
      %p200 = scmp.ne.s32.totalorder %s188, %s189
      %p201 = scmp.eq.s32.totalorder %s32, 1
      %p202 = por %p200, %p201
      %p204 = scmp.ne.s32.totalorder %s189, %s203
      %p205 = scmp.eq.s32.totalorder %s32, 0
      %p206 = por %p204, %p205
      %s208 = sadd.s32 %s207, 1
      %p211 = scmp.eq.s32.totalorder %s26, 1
      %p212 = scmp.ne.s32.totalorder %s207, %s209
      %p213 = scmp.eq.s32.totalorder %s26, 0
      %p214 = por %p212, %p213
      %p215 = scmp.ne.s32.totalorder %s207, %s209
      %p216 = scmp.eq.s32.totalorder %s31, 1
      %p217 = por %p215, %p216
      %p218 = scmp.ne.s32.totalorder %s209, %s210
      %p219 = scmp.eq.s32.totalorder %s31, 0
      %p220 = por %p218, %p219
      %p221 = scmp.ne.s32.totalorder %s209, %s210
      %p222 = scmp.eq.s32.totalorder %s32, 1
      %p223 = por %p221, %p222
      %p225 = scmp.ne.s32.totalorder %s210, %s224
      %p226 = scmp.eq.s32.totalorder %s32, 0
      %p227 = por %p225, %p226
      %s229 = sadd.s32 %s228, 1
      %p232 = scmp.eq.s32.totalorder %s26, 1
      %p233 = scmp.ne.s32.totalorder %s228, %s230
      %p234 = scmp.eq.s32.totalorder %s26, 0
      %p235 = por %p233, %p234
      %p236 = scmp.ne.s32.totalorder %s228, %s230
      %p237 = scmp.eq.s32.totalorder %s31, 1
      %p238 = por %p236, %p237
      %p239 = scmp.ne.s32.totalorder %s230, %s231
      %p240 = scmp.eq.s32.totalorder %s31, 0
      %p241 = por %p239, %p240
      %p242 = scmp.ne.s32.totalorder %s230, %s231
      %p243 = scmp.eq.s32.totalorder %s32, 1
      %p244 = por %p242, %p243
      %p246 = scmp.ne.s32.totalorder %s231, %s245
      %p247 = scmp.eq.s32.totalorder %s32, 0
      %p248 = por %p246, %p247
      %s250 = sadd.s32 %s249, 1
      %p253 = scmp.eq.s32.totalorder %s26, 1
      %p254 = scmp.ne.s32.totalorder %s249, %s251
      %p255 = scmp.eq.s32.totalorder %s26, 0
      %p256 = por %p254, %p255
      %p257 = scmp.ne.s32.totalorder %s249, %s251
      %p258 = scmp.eq.s32.totalorder %s31, 1
      %p259 = por %p257, %p258
      %p260 = scmp.ne.s32.totalorder %s251, %s252
      %p261 = scmp.eq.s32.totalorder %s31, 0
      %p262 = por %p260, %p261
      %p263 = scmp.ne.s32.totalorder %s251, %s252
      %p264 = scmp.eq.s32.totalorder %s32, 1
      %p265 = por %p263, %p264
      %p267 = scmp.ne.s32.totalorder %s252, %s266
      %p268 = scmp.eq.s32.totalorder %s32, 0
      %p269 = por %p267, %p268
      %s271 = sadd.s32 %s270, 1
      %p274 = scmp.eq.s32.totalorder %s26, 1
      %p275 = scmp.ne.s32.totalorder %s270, %s272
      %p276 = scmp.eq.s32.totalorder %s26, 0
      %p277 = por %p275, %p276
      %p278 = scmp.ne.s32.totalorder %s270, %s272
      %p279 = scmp.eq.s32.totalorder %s31, 1
      %p280 = por %p278, %p279
      %p281 = scmp.ne.s32.totalorder %s272, %s273
      %p282 = scmp.eq.s32.totalorder %s31, 0
      %p283 = por %p281, %p282
      %p284 = scmp.ne.s32.totalorder %s272, %s273
      %p285 = scmp.eq.s32.totalorder %s32, 1
      %p286 = por %p284, %p285
      %p288 = scmp.ne.s32.totalorder %s273, %s287
      %p289 = scmp.eq.s32.totalorder %s32, 0
      %p290 = por %p288, %p289
      %s291 = ssub.s32 %s26, %s33
      %p292 = scmp.eq.s32.totalorder %s291, 0
      %s294 = sadd.s32 %s293, 1
      %s295 = scalar_select %p292, %s293, %s294
      %p298 = pneg %p292
      %p299 = scmp.eq.s32.totalorder %s26, 1
      %p300 = por %p298, %p299
      %p301 = scmp.ne.s32.totalorder %s293, %s296
      %p302 = scmp.eq.s32.totalorder %s26, 0
      %p303 = por %p301, %p302
      %p304 = scmp.ne.s32.totalorder %s293, %s296
      %p305 = scmp.eq.s32.totalorder %s31, 1
      %p306 = por %p304, %p305
      %p307 = scmp.ne.s32.totalorder %s296, %s297
      %p308 = scmp.eq.s32.totalorder %s31, 0
      %p309 = por %p307, %p308
      %p310 = scmp.ne.s32.totalorder %s296, %s297
      %p311 = scmp.eq.s32.totalorder %s32, 1
      %p312 = por %p310, %p311
      %p314 = scmp.ne.s32.totalorder %s297, %s313
      %p315 = scmp.eq.s32.totalorder %s32, 0
      %p316 = por %p314, %p315
      %p317 = scmp.le.s32.totalorder 1, %s26
      %p318 = scmp.lt.s32.totalorder %s26, 3
      %p319 = pnand %p317, %p318
      %p320 = pneg %p319
      // Predicated region
      $region9: #{tpu_custom_call.1} parent=5 // pred_check
        _
      $region10: #{tpu_custom_call.1} parent=5 // pred_check_branch
        %322 = sbr.rel (%p319) target = $region12
      $region11: #{tpu_custom_call.1} parent=5 // pred_region
        %s323 = ssub.s32 %s26, 1
        // Predicated region
        $region13: #{tpu_custom_call.1} parent=11 // pred_check
          %p324 = pneg %p73
        $region14: #{tpu_custom_call.1} parent=11 // pred_check_branch
          %326 = sbr.rel (%p324) target = $region16
        $region15: #{tpu_custom_call.1} parent=11 // pred_region
          _
        $region16: #{tpu_custom_call.1} parent=11 // pred_fallthru
          _
        // Predicated region
        $region17: #{tpu_custom_call.1} parent=11 // pred_check
          %p327 = pneg %p94
        $region18: #{tpu_custom_call.1} parent=11 // pred_check_branch
          %329 = sbr.rel (%p327) target = $region20
        $region19: #{tpu_custom_call.1} parent=11 // pred_region
          _
        $region20: #{tpu_custom_call.1} parent=11 // pred_fallthru
          _
        // Predicated region
        $region21: #{tpu_custom_call.1} parent=11 // pred_check
          %p330 = pneg %p115
        $region22: #{tpu_custom_call.1} parent=11 // pred_check_branch
          %332 = sbr.rel (%p330) target = $region24
        $region23: #{tpu_custom_call.1} parent=11 // pred_region
          _
        $region24: #{tpu_custom_call.1} parent=11 // pred_fallthru
          _
        // Predicated region
        $region25: #{tpu_custom_call.1} parent=11 // pred_check
          %p333 = pneg %p136
        $region26: #{tpu_custom_call.1} parent=11 // pred_check_branch
          %335 = sbr.rel (%p333) target = $region28
        $region27: #{tpu_custom_call.1} parent=11 // pred_region
          _
        $region28: #{tpu_custom_call.1} parent=11 // pred_fallthru
          _
        // Predicated region
        $region29: #{tpu_custom_call.1} parent=11 // pred_check
          %p336 = pneg %p157
        $region30: #{tpu_custom_call.1} parent=11 // pred_check_branch
          %338 = sbr.rel (%p336) target = $region32
        $region31: #{tpu_custom_call.1} parent=11 // pred_region
          _
        $region32: #{tpu_custom_call.1} parent=11 // pred_fallthru
          _
        // Predicated region
        $region33: #{tpu_custom_call.1} parent=11 // pred_check
          %p339 = pneg %p178
        $region34: #{tpu_custom_call.1} parent=11 // pred_check_branch
          %341 = sbr.rel (%p339) target = $region36
        $region35: #{tpu_custom_call.1} parent=11 // pred_region
          _
        $region36: #{tpu_custom_call.1} parent=11 // pred_fallthru
          _
        // Predicated region
        $region37: #{tpu_custom_call.1} parent=11 // pred_check
          %p342 = pneg %p199
        $region38: #{tpu_custom_call.1} parent=11 // pred_check_branch
          %344 = sbr.rel (%p342) target = $region40
        $region39: #{tpu_custom_call.1} parent=11 // pred_region
          _
        $region40: #{tpu_custom_call.1} parent=11 // pred_fallthru
          _
        // Predicated region
        $region41: #{tpu_custom_call.1} parent=11 // pred_check
          %p345 = pneg %p220
        $region42: #{tpu_custom_call.1} parent=11 // pred_check_branch
          %347 = sbr.rel (%p345) target = $region44
        $region43: #{tpu_custom_call.1} parent=11 // pred_region
          _
        $region44: #{tpu_custom_call.1} parent=11 // pred_fallthru
          _
        // Predicated region
        $region45: #{tpu_custom_call.1} parent=11 // pred_check
          %p348 = pneg %p241
        $region46: #{tpu_custom_call.1} parent=11 // pred_check_branch
          %350 = sbr.rel (%p348) target = $region48
        $region47: #{tpu_custom_call.1} parent=11 // pred_region
          _
        $region48: #{tpu_custom_call.1} parent=11 // pred_fallthru
          _
        // Predicated region
        $region49: #{tpu_custom_call.1} parent=11 // pred_check
          %p351 = pneg %p262
        $region50: #{tpu_custom_call.1} parent=11 // pred_check_branch
          %353 = sbr.rel (%p351) target = $region52
        $region51: #{tpu_custom_call.1} parent=11 // pred_region
          _
        $region52: #{tpu_custom_call.1} parent=11 // pred_fallthru
          _
        // Predicated region
        $region53: #{tpu_custom_call.1} parent=11 // pred_check
          %p354 = pneg %p283
        $region54: #{tpu_custom_call.1} parent=11 // pred_check_branch
          %356 = sbr.rel (%p354) target = $region56
        $region55: #{tpu_custom_call.1} parent=11 // pred_region
          _
        $region56: #{tpu_custom_call.1} parent=11 // pred_fallthru
          _
      $region12: #{tpu_custom_call.1} parent=5 // pred_fallthru
        _
      %p357 = scmp.lt.s32.totalorder %s26, 2
      // Predicated region
      $region57: #{tpu_custom_call.1} parent=5 // pred_check
        %p358 = pneg %p357
      $region58: #{tpu_custom_call.1} parent=5 // pred_check_branch
        %360 = sbr.rel (%p358) target = $region60
      $region59: #{tpu_custom_call.1} parent=5 // pred_region
        // Predicated region
        $region61: #{tpu_custom_call.1} parent=59 // pred_check
          %p361 = pneg %p46
        $region62: #{tpu_custom_call.1} parent=59 // pred_check_branch
          %363 = sbr.rel (%p361) target = $region64
        $region63: #{tpu_custom_call.1} parent=59 // pred_region
          %s364 = sand.u32 %s36, 1
          %s365 = scalar_lea.sflag [#allocation4], %s364
          %s366 = sand.u32 %s36, 1
          %s367 = smul.addr %s366, 88
          %s368 = scalar_lea.vmem [#allocation3], %s367
          %s369 = smul.u32 2, %s26
          %s371 = ssub.s32 1408, 1408
          %372 = vsyncadd %s365, %s371
          %s373 = smul.addr %s369, 64
          %s374 = scalar_lea.hbm %s0, %s373
          %s375 = sshll.u32 %s368, 4
          %s376 = int_to_ptr.vmem [resolvable:$true] %s375
          %381 = dma.hbm_to_vmem [thread:$0]  %s374, 1408, %s376, %s365, 256, 128, 8
        $region64: #{tpu_custom_call.1} parent=59 // pred_fallthru
          _
      $region60: #{tpu_custom_call.1} parent=5 // pred_fallthru
        _
      %p382 = scmp.le.s32.totalorder 1, %s26
      %p383 = scmp.lt.s32.totalorder %s26, 3
      %p384 = pnand %p382, %p383
      %p385 = pneg %p384
      // Predicated region
      $region65: #{tpu_custom_call.1} parent=5 // pred_check
        _
      $region66: #{tpu_custom_call.1} parent=5 // pred_check_branch
        %387 = sbr.rel (%p384) target = $region68
      $region67: #{tpu_custom_call.1} parent=5 // pred_region
        %s388 = ssub.s32 %s26, 1
        %s389 = sand.u32 %s39, 1
        %s390 = scalar_lea.sflag [#allocation4], %s389
        %s391 = sand.u32 %s39, 1
        %s392 = smul.addr %s391, 88
        %s393 = scalar_lea.vmem [#allocation3], %s392
        // Predicated region
        $region69: #{tpu_custom_call.1} parent=67 // pred_check
          %p394 = pneg %p52
        $region70: #{tpu_custom_call.1} parent=67 // pred_check_branch
          %396 = sbr.rel (%p394) target = $region72
        $region71: #{tpu_custom_call.1} parent=67 // pred_region
          %397 = dma.done %s390, 1408
        $region72: #{tpu_custom_call.1} parent=67 // pred_fallthru
          _
        %s398 = sand.u32 %s39, 1
        %s399 = scalar_lea.sflag [#allocation4], %s398
        %s400 = sand.u32 %s39, 1
        %s401 = smul.addr %s400, 88
        %s402 = scalar_lea.vmem [#allocation3], %s401
        %p403 = pneg %p52
        %p404 = pneg %p49
        %p405 = pneg %p73
        %p406 = pneg %p70
        %p407 = pneg %p94
        %p408 = pneg %p91
        %p409 = pneg %p115
        %p410 = pneg %p112
        %p411 = pneg %p136
        %p412 = pneg %p133
        %p413 = pneg %p157
        %p414 = pneg %p154
        %p415 = pneg %p178
        %p416 = pneg %p175
        %p417 = pneg %p199
        %p418 = pneg %p196
        %p419 = pneg %p220
        %p420 = pneg %p217
        %p421 = pneg %p241
        %p422 = pneg %p238
        %p423 = pneg %p262
        %p424 = pneg %p259
        %p425 = pneg %p283
        %p426 = pneg %p280
        %p427 = pneg %p309
        %p428 = pneg %p306
        %s429 = sand.u32 %s296, 1
        %s430 = scalar_lea.sflag [#allocation5], %s429
        %s431 = sand.u32 %s296, 1
        %s432 = smul.addr %s431, 2
        %s433 = scalar_lea.vmem [#allocation6], %s432
        %s434 = smul.u32 2, %s31
        %s435 = smul.u32 2, %s31
        %v437 = vld [vmem:[%s393] sm:$0xff]
        %v438 = vld [vmem:[%s393 + $0x8] sm:$0xff]
        %v439 = vld [vmem:[%s393 + $0x10] sm:$0xff]
        %v440 = vld [vmem:[%s393 + $0x18] sm:$0xff]
        %v441 = vld [vmem:[%s393 + $0x20] sm:$0xff]
        %v442 = vld [vmem:[%s393 + $0x28] sm:$0xff]
        %v443 = vld [vmem:[%s393 + $0x30] sm:$0xff]
        %v444 = vld [vmem:[%s393 + $0x38] sm:$0xff]
        %v445 = vld [vmem:[%s393 + $0x40] sm:$0xff]
        %v446 = vld [vmem:[%s393 + $0x48] sm:$0xff]
        %v447 = vld [vmem:[%s393 + $0x50] sm:$0x11]
        %v448 = vld [vmem:[%s1] sm:$0xf]
        %v449 = vld [vmem:[%s1 + $0x4] sm:$0xf]
        %v450 = vld [vmem:[%s1 + $0x8] sm:$0xf]
        %v451 = vld [vmem:[%s1 + $0xc] sm:$0xf]
        %v452 = vld [vmem:[%s2] sm:$0xff]
        %v453 = vld [vmem:[%s2 + $0x8] sm:$0xff]
        %v454 = vld [vmem:[%s2 + $0x10] sm:$0xff]
        %v455 = vld [vmem:[%s2 + $0x18] sm:$0xff]
        %457 = vset.pattern.permute.xlu0 0
        %458 = vperm.xlu0 %457, %v452
        %v459 = vpop.permute.xlu0 %458
        %462 = vset.pattern.permute.xlu0 0
        %463 = vperm.xlu0 %462, %v453
        %v464 = vpop.permute.xlu0 %463
        %467 = vset.pattern.permute.xlu0 0
        %468 = vperm.xlu0 %467, %v454
        %v469 = vpop.permute.xlu0 %468
        %472 = vset.pattern.permute.xlu0 0
        %473 = vperm.xlu0 %472, %v455
        %v474 = vpop.permute.xlu0 %473
        %v480 = vunpack.c.l.b16 %v448
        %v481 = vunpack.c.l.b16 %v449
        %v482 = vunpack.c.l.b16 %v450
        %v483 = vunpack.c.l.b16 %v451
        %v484 = vpack.c.b16 %v481, %v480
        %v485 = vpack.c.b16 %v483, %v482
        %v497 = vunpack.c.l.b16 %v437
        %v498 = vunpack.c.h.b16 %v437
        %v499 = vunpack.c.l.b16 %v438
        %v500 = vunpack.c.h.b16 %v438
        %v501 = vunpack.c.l.b16 %v439
        %v502 = vunpack.c.h.b16 %v439
        %v503 = vunpack.c.l.b16 %v440
        %v504 = vunpack.c.h.b16 %v440
        %v505 = vunpack.c.l.b16 %v441
        %v506 = vunpack.c.h.b16 %v441
        %v507 = vunpack.c.l.b16 %v442
        %v508 = vunpack.c.h.b16 %v442
        %v509 = vunpack.c.l.b16 %v443
        %v510 = vunpack.c.h.b16 %v443
        %v511 = vunpack.c.l.b16 %v444
        %v512 = vunpack.c.h.b16 %v444
        %v513 = vunpack.c.l.b16 %v445
        %v514 = vunpack.c.h.b16 %v445
        %v515 = vunpack.c.l.b16 %v446
        %v516 = vunpack.c.h.b16 %v446
        %v517 = vunpack.c.l.b16 %v447
        %v518 = vunpack.c.h.b16 %v447
        %v519 = vpack.c.b16 %v499, %v497
        %v520 = vpack.c.b16 %v500, %v498
        %v521 = vpack.c.b16 %v503, %v501
        %v522 = vpack.c.b16 %v504, %v502
        %v523 = vpack.c.b16 %v507, %v505
        %v524 = vpack.c.b16 %v508, %v506
        %v525 = vpack.c.b16 %v511, %v509
        %v526 = vpack.c.b16 %v512, %v510
        %v527 = vpack.c.b16 %v515, %v513
        %v528 = vpack.c.b16 %v516, %v514
        %v529 = vpack.c.b16 %v517, %v517
        %v530 = vpack.c.b16 %v518, %v518
        %vm541 = vcmask 662528
        %v543 = vsel %vm541, %v484, 0
        %v546 = vsel %vm541, %v485, 0
        %vm548 = vcmask 1040384
        %v549 = vsel 0, 4294967295, 65535
        %v550 = vsel %vm548, %v549, 0
        %v552 = vand.u32 %v529, %v550
        %v555 = vand.u32 %v530, %v550
        %557 = vmatprep.subr.bf16.mxu0 %v520
        %558 = vmatpush1.bf16.msra.mxu0 %v519
        %559 = vmatprep.subr.bf16.mxu0 %v522
        %560 = vmatpush1.bf16.msra.mxu0 %v521
        %561 = vmatprep.subr.bf16.mxu0 %v524
        %562 = vmatpush1.bf16.msra.mxu0 %v523
        %563 = vmatprep.subr.bf16.mxu0 %v526
        %564 = vmatpush1.bf16.msra.mxu0 %v525
        %565 = vmatprep.subr.bf16.mxu0 %v528
        %566 = vmatpush1.bf16.msra.mxu0 %v527
        %567 = vmatprep.subr.bf16.mxu0 %v555
        %568 = vmatpush1.bf16.msra.mxu0 %v552
        %569 = vmatprep.subr.bf16.mxu0 0
        %570 = vmatpush1.bf16.msra.mxu0 0
        %571 = vmatprep.subr.bf16.mxu0 0
        %572 = vmatpush1.bf16.msra.mxu0 0
        %573 = vmatprep.subr.bf16.mxu0 0
        %574 = vmatpush1.bf16.msra.mxu0 0
        %575 = vmatprep.subr.bf16.mxu0 0
        %576 = vmatpush1.bf16.msra.mxu0 0
        %577 = vmatprep.subr.bf16.mxu0 0
        %578 = vmatpush1.bf16.msra.mxu0 0
        %579 = vmatprep.subr.bf16.mxu0 0
        %580 = vmatpush1.bf16.msra.mxu0 0
        %581 = vmatprep.subr.bf16.mxu0 0
        %582 = vmatpush1.bf16.msra.mxu0 0
        %583 = vmatprep.subr.bf16.mxu0 0
        %584 = vmatpush1.bf16.msra.mxu0 0
        %585 = vmatprep.subr.bf16.mxu0 0
        %586 = vmatpush1.bf16.msra.mxu0 0
        %587 = vmatprep.subr.bf16.mxu0 0
        %588 = vmatpush1.bf16.msra.mxu0 0
        %589 = vmatprep.mubr.bf16.mxu0 0
        %590 = vmatmul.mubr.bf16.gmra.mrb[0].mxu0 %v543
        %v591 = vpop.f32.mrb[0].mxu0
        %v592 = vadd.f32 %v459, %v591
        %v593 = vpop.f32.mrb[0].mxu0
        %v594 = vadd.f32 %v459, %v593
        %v595 = vpop.f32.mrb[0].mxu0
        %v596 = vadd.f32 %v464, %v595
        %v597 = vpop.f32.mrb[0].mxu0
        %v598 = vadd.f32 %v464, %v597
        %599 = vmatprep.mubr.bf16.mxu0 0
        %600 = vmatmul.mubr.bf16.gmra.mrb[0].mxu0 %v546
        %v601 = vpop.f32.mrb[0].mxu0
        %v602 = vadd.f32 %v469, %v601
        %v603 = vpop.f32.mrb[0].mxu0
        %v604 = vadd.f32 %v469, %v603
        %v605 = vpop.f32.mrb[0].mxu0
        %v606 = vadd.f32 %v474, %v605
        %v607 = vpop.f32.mrb[0].mxu0
        %v608 = vadd.f32 %v474, %v607
        %609 = vdwg.mxu0
        %v610 = vmax.f32 %v592, 0.0
        %v611 = vmax.f32 %v594, 0.0
        %v612 = vmax.f32 %v596, 0.0
        %v613 = vmax.f32 %v598, 0.0
        %v614 = vmax.f32 %v602, 0.0
        %v615 = vmax.f32 %v604, 0.0
        %v616 = vmax.f32 %v606, 0.0
        %v617 = vmax.f32 %v608, 0.0
        %v618 = vunpack.c.l.bf16 %v442
        %v619 = vunpack.c.h.bf16 %v442
        %v620 = vmax.f32 %v618, 0.0
        %v621 = vmax.f32 %v619, 0.0
        %v622 = vld [vmem:[%s3] sm:$0xff]
        %v623 = vld [vmem:[%s3 + $0x8] sm:$0xff]
        %625 = vset.pattern.permute.xlu0 0
        %626 = vperm.xlu0 %625, %v622
        %v627 = vpop.permute.xlu0 %626
        %630 = vset.pattern.permute.xlu0 0
        %631 = vperm.xlu0 %630, %v623
        %v632 = vpop.permute.xlu0 %631
        %v634 = vlaneseq
        %v635 = vshrl.u32 %v634, 7
        %v636 = vsub.s32 0, %v635
        %v637 = vrot.slane %v620, %v636
        %v638 = vlaneseq
        %v639 = vshrl.u32 %v638, 7
        %v640 = vsub.s32 0, %v639
        %v641 = vrot.slane %v621, %v640
        %v642 = vmul.f32 %v627, %v637
        %v643 = vmul.f32 %v627, %v641
        %v644 = vmul.f32 %v632, %v637
        %v645 = vmul.f32 %v632, %v641
        %v646 = vld [vmem:[%s4] sm:$0xf]
        %v647 = vld [vmem:[%s4 + $0x4] sm:$0xf]
        %v648 = vpack.c.bf16 %v612, %v610
        %v649 = vpack.c.bf16 %v613, %v611
        %v650 = vpack.c.bf16 %v616, %v614
        %v651 = vpack.c.bf16 %v617, %v615
        %v654 = vunpack.c.l.b16 %v646
        %v655 = vunpack.c.l.b16 %v647
        %v656 = vpack.c.b16 %v655, %v654
        %vm657 = vcmask 261120
        %v659 = vsel %vm657, %v656, 0
        %661 = vmatprep.subr.bf16.mxu0 %v649
        %662 = vmatpush1.bf16.msra.mxu0 %v648
        %663 = vmatprep.subr.bf16.mxu0 %v651
        %664 = vmatpush1.bf16.msra.mxu0 %v650
        %665 = vmatprep.subr.bf16.mxu0 0
        %666 = vmatpush1.bf16.msra.mxu0 0
        %667 = vmatprep.subr.bf16.mxu0 0
        %668 = vmatpush1.bf16.msra.mxu0 0
        %669 = vmatprep.subr.bf16.mxu0 0
        %670 = vmatpush1.bf16.msra.mxu0 0
        %671 = vmatprep.subr.bf16.mxu0 0
        %672 = vmatpush1.bf16.msra.mxu0 0
        %673 = vmatprep.subr.bf16.mxu0 0
        %674 = vmatpush1.bf16.msra.mxu0 0
        %675 = vmatprep.subr.bf16.mxu0 0
        %676 = vmatpush1.bf16.msra.mxu0 0
        %677 = vmatprep.subr.bf16.mxu0 0
        %678 = vmatpush1.bf16.msra.mxu0 0
        %679 = vmatprep.subr.bf16.mxu0 0
        %680 = vmatpush1.bf16.msra.mxu0 0
        %681 = vmatprep.subr.bf16.mxu0 0
        %682 = vmatpush1.bf16.msra.mxu0 0
        %683 = vmatprep.subr.bf16.mxu0 0
        %684 = vmatpush1.bf16.msra.mxu0 0
        %685 = vmatprep.subr.bf16.mxu0 0
        %686 = vmatpush1.bf16.msra.mxu0 0
        %687 = vmatprep.subr.bf16.mxu0 0
        %688 = vmatpush1.bf16.msra.mxu0 0
        %689 = vmatprep.subr.bf16.mxu0 0
        %690 = vmatpush1.bf16.msra.mxu0 0
        %691 = vmatprep.subr.bf16.mxu0 0
        %692 = vmatpush1.bf16.msra.mxu0 0
        %693 = vmatprep.mubr.bf16.mxu0 0
        %694 = vmatmul.mubr.bf16.gmra.mrb[0].mxu0 %v659
        %v695 = vpop.f32.mrb[0].mxu0
        %v696 = vadd.f32 0.0, %v695
        %v697 = vpop.f32.mrb[0].mxu0
        %v698 = vadd.f32 0.0, %v697
        %v699 = vpop.f32.mrb[0].mxu0
        %v700 = vadd.f32 0.0, %v699
        %v701 = vpop.f32.mrb[0].mxu0
        %v702 = vadd.f32 0.0, %v701
        %703 = vdwg.mxu0
        %v704 = vadd.f32 %v642, %v696
        %v705 = vadd.f32 %v643, %v698
        %v706 = vadd.f32 %v644, %v700
        %v707 = vadd.f32 %v645, %v702
        %v708 = vld [vmem:[%s5] sm:$0xff]
        %v709 = vld [vmem:[%s5 + $0x8] sm:$0xff]
        %711 = vset.pattern.permute.xlu0 0
        %712 = vperm.xlu0 %711, %v708
        %v713 = vpop.permute.xlu0 %712
        %716 = vset.pattern.permute.xlu0 0
        %717 = vperm.xlu0 %716, %v709
        %v718 = vpop.permute.xlu0 %717
        %v720 = vadd.f32 %v704, %v713
        %v721 = vadd.f32 %v705, %v713
        %v722 = vadd.f32 %v706, %v718
        %v723 = vadd.f32 %v707, %v718
        %v724 = vmax.f32 %v720, 0.0
        %v725 = vmax.f32 %v721, 0.0
        %v726 = vmax.f32 %v722, 0.0
        %v727 = vmax.f32 %v723, 0.0
        %v728 = vld [vmem:[%s6] sm:$0xff]
        %v729 = vld [vmem:[%s7] sm:$0xff]
        %731 = vset.pattern.permute.xlu0 0
        %732 = vperm.xlu0 %731, %v729
        %v733 = vpop.permute.xlu0 %732
        %vm735 = vcmask 130048
        %v737 = vsel %vm735, %v728, 0
        %739 = vmatprep.subr.mxu0 %v725
        %740 = vmatpush1.msra.mxu0 %v724
        %741 = vmatprep.subr.mxu0 %v727
        %742 = vmatpush1.msra.mxu0 %v726
        %743 = vmatprep.subr.mxu0 0.0
        %744 = vmatpush1.msra.mxu0 0.0
        %745 = vmatprep.subr.mxu0 0.0
        %746 = vmatpush1.msra.mxu0 0.0
        %747 = vmatprep.subr.mxu0 0.0
        %748 = vmatpush1.msra.mxu0 0.0
        %749 = vmatprep.subr.mxu0 0.0
        %750 = vmatpush1.msra.mxu0 0.0
        %751 = vmatprep.subr.mxu0 0.0
        %752 = vmatpush1.msra.mxu0 0.0
        %753 = vmatprep.subr.mxu0 0.0
        %754 = vmatpush1.msra.mxu0 0.0
        %755 = vmatprep.subr.mxu0 0.0
        %756 = vmatpush1.msra.mxu0 0.0
        %757 = vmatprep.subr.mxu0 0.0
        %758 = vmatpush1.msra.mxu0 0.0
        %759 = vmatprep.subr.mxu0 0.0
        %760 = vmatpush1.msra.mxu0 0.0
        %761 = vmatprep.subr.mxu0 0.0
        %762 = vmatpush1.msra.mxu0 0.0
        %763 = vmatprep.subr.mxu0 0.0
        %764 = vmatpush1.msra.mxu0 0.0
        %765 = vmatprep.subr.mxu0 0.0
        %766 = vmatpush1.msra.mxu0 0.0
        %767 = vmatprep.subr.mxu0 0.0
        %768 = vmatpush1.msra.mxu0 0.0
        %769 = vmatprep.subr.mxu0 0.0
        %770 = vmatpush1.msra.mxu0 0.0
        %771 = vmatprep.subr.mxu0 0.0
        %772 = vmatpush1.msra.mxu0 0.0
        %773 = vmatprep.subr.mxu0 0.0
        %774 = vmatpush1.msra.mxu0 0.0
        %775 = vmatprep.subr.mxu0 0.0
        %776 = vmatpush1.msra.mxu0 0.0
        %777 = vmatprep.subr.mxu0 0.0
        %778 = vmatpush1.msra.mxu0 0.0
        %779 = vmatprep.subr.mxu0 0.0
        %780 = vmatpush1.msra.mxu0 0.0
        %781 = vmatprep.subr.mxu0 0.0
        %782 = vmatpush1.msra.mxu0 0.0
        %783 = vmatprep.subr.mxu0 0.0
        %784 = vmatpush1.msra.mxu0 0.0
        %785 = vmatprep.subr.mxu0 0.0
        %786 = vmatpush1.msra.mxu0 0.0
        %787 = vmatprep.subr.mxu0 0.0
        %788 = vmatpush1.msra.mxu0 0.0
        %789 = vmatprep.subr.mxu0 0.0
        %790 = vmatpush1.msra.mxu0 0.0
        %791 = vmatprep.subr.mxu0 0.0
        %792 = vmatpush1.msra.mxu0 0.0
        %793 = vmatprep.subr.mxu0 0.0
        %794 = vmatpush1.msra.mxu0 0.0
        %795 = vmatprep.subr.mxu0 0.0
        %796 = vmatpush1.msra.mxu0 0.0
        %797 = vmatprep.subr.mxu0 0.0
        %798 = vmatpush1.msra.mxu0 0.0
        %799 = vmatprep.subr.mxu0 0.0
        %800 = vmatpush1.msra.mxu0 0.0
        %801 = vmatprep.subr.mxu0 0.0
        %802 = vmatpush1.msra.mxu0 0.0
        %803 = vmatprep.mubr.f32.mxu0 0.0
        %804 = vmatmul.mubr.f32.gmra.mrb[0].mxu0 %v737
        %v805 = vpop.f32.mrb[0].mxu0
        %v806 = vadd.f32 %v733, %v805
        %v807 = vpop.f32.mrb[0].mxu0
        %v808 = vadd.f32 %v733, %v807
        %809 = vdwg.mxu0
        %v810 = vmax.f32 %v806, 0.0
        %v811 = vmax.f32 %v808, 0.0
        %v812 = vld [vmem:[%s8] sm:$0xf]
        %v813 = vld [vmem:[%s9] sm:$0xf]
        %815 = vset.pattern.permute.xlu0 0
        %816 = vperm.xlu0 %815, %v813
        %v817 = vpop.permute.xlu0 %816
        %vm819 = vcmask 64512
        %v821 = vsel %vm819, %v812, 0
        %823 = vmatprep.subr.mxu0 %v811
        %824 = vmatpush1.msra.mxu0 %v810
        %825 = vmatprep.subr.mxu0 0.0
        %826 = vmatpush1.msra.mxu0 0.0
        %827 = vmatprep.subr.mxu0 0.0
        %828 = vmatpush1.msra.mxu0 0.0
        %829 = vmatprep.subr.mxu0 0.0
        %830 = vmatpush1.msra.mxu0 0.0
        %831 = vmatprep.subr.mxu0 0.0
        %832 = vmatpush1.msra.mxu0 0.0
        %833 = vmatprep.subr.mxu0 0.0
        %834 = vmatpush1.msra.mxu0 0.0
        %835 = vmatprep.subr.mxu0 0.0
        %836 = vmatpush1.msra.mxu0 0.0
        %837 = vmatprep.subr.mxu0 0.0
        %838 = vmatpush1.msra.mxu0 0.0
        %839 = vmatprep.subr.mxu0 0.0
        %840 = vmatpush1.msra.mxu0 0.0
        %841 = vmatprep.subr.mxu0 0.0
        %842 = vmatpush1.msra.mxu0 0.0
        %843 = vmatprep.subr.mxu0 0.0
        %844 = vmatpush1.msra.mxu0 0.0
        %845 = vmatprep.subr.mxu0 0.0
        %846 = vmatpush1.msra.mxu0 0.0
        %847 = vmatprep.subr.mxu0 0.0
        %848 = vmatpush1.msra.mxu0 0.0
        %849 = vmatprep.subr.mxu0 0.0
        %850 = vmatpush1.msra.mxu0 0.0
        %851 = vmatprep.subr.mxu0 0.0
        %852 = vmatpush1.msra.mxu0 0.0
        %853 = vmatprep.subr.mxu0 0.0
        %854 = vmatpush1.msra.mxu0 0.0
        %855 = vmatprep.subr.mxu0 0.0
        %856 = vmatpush1.msra.mxu0 0.0
        %857 = vmatprep.subr.mxu0 0.0
        %858 = vmatpush1.msra.mxu0 0.0
        %859 = vmatprep.subr.mxu0 0.0
        %860 = vmatpush1.msra.mxu0 0.0
        %861 = vmatprep.subr.mxu0 0.0
        %862 = vmatpush1.msra.mxu0 0.0
        %863 = vmatprep.subr.mxu0 0.0
        %864 = vmatpush1.msra.mxu0 0.0
        %865 = vmatprep.subr.mxu0 0.0
        %866 = vmatpush1.msra.mxu0 0.0
        %867 = vmatprep.subr.mxu0 0.0
        %868 = vmatpush1.msra.mxu0 0.0
        %869 = vmatprep.subr.mxu0 0.0
        %870 = vmatpush1.msra.mxu0 0.0
        %871 = vmatprep.subr.mxu0 0.0
        %872 = vmatpush1.msra.mxu0 0.0
        %873 = vmatprep.subr.mxu0 0.0
        %874 = vmatpush1.msra.mxu0 0.0
        %875 = vmatprep.subr.mxu0 0.0
        %876 = vmatpush1.msra.mxu0 0.0
        %877 = vmatprep.subr.mxu0 0.0
        %878 = vmatpush1.msra.mxu0 0.0
        %879 = vmatprep.subr.mxu0 0.0
        %880 = vmatpush1.msra.mxu0 0.0
        %881 = vmatprep.subr.mxu0 0.0
        %882 = vmatpush1.msra.mxu0 0.0
        %883 = vmatprep.subr.mxu0 0.0
        %884 = vmatpush1.msra.mxu0 0.0
        %885 = vmatprep.subr.mxu0 0.0
        %886 = vmatpush1.msra.mxu0 0.0
        %887 = vmatprep.mubr.f32.mxu0 0.0
        %888 = vmatmul.mubr.f32.gmra.mrb[0].mxu0 %v821
        %v889 = vpop.f32.mrb[0].mxu0
        %v890 = vadd.f32 %v817, %v889
        %v891 = vpop.f32.mrb[0].mxu0
        %v892 = vadd.f32 %v817, %v891
        %893 = vdwg.mxu0
        %v894 = vmax.f32 %v890, 0.0
        %v895 = vmax.f32 %v892, 0.0
        %v896 = vld [vmem:[%s10] sm:$0x1]
        %v897 = vld [vmem:[#allocation2] sm:$0x1]
        %899 = vset.pattern.permute.xlu0 0
        %900 = vperm.xlu0 %899, %v897
        %v901 = vpop.permute.xlu0 %900
        %v903 = vlaneseq
        %v904 = vshrl.u32 %v903, 7
        %v905 = vsub.s32 0, %v904
        %v906 = vrot.slane %v901, %v905
        %vm907 = vcmask 31744
        %v909 = vsel %vm907, %v896, 0
        %vm911 = vcmask 1043456
        %v913 = vsel %vm911, %v894, 0
        %v916 = vsel %vm911, %v895, 0
        %918 = vmatprep.subr.mxu0 %v916
        %919 = vmatpush1.msra.mxu0 %v913
        %920 = vmatprep.subr.mxu0 0.0
        %921 = vmatpush1.msra.mxu0 0.0
        %922 = vmatprep.subr.mxu0 0.0
        %923 = vmatpush1.msra.mxu0 0.0
        %924 = vmatprep.subr.mxu0 0.0
        %925 = vmatpush1.msra.mxu0 0.0
        %926 = vmatprep.subr.mxu0 0.0
        %927 = vmatpush1.msra.mxu0 0.0
        %928 = vmatprep.subr.mxu0 0.0
        %929 = vmatpush1.msra.mxu0 0.0
        %930 = vmatprep.subr.mxu0 0.0
        %931 = vmatpush1.msra.mxu0 0.0
        %932 = vmatprep.subr.mxu0 0.0
        %933 = vmatpush1.msra.mxu0 0.0
        %934 = vmatprep.subr.mxu0 0.0
        %935 = vmatpush1.msra.mxu0 0.0
        %936 = vmatprep.subr.mxu0 0.0
        %937 = vmatpush1.msra.mxu0 0.0
        %938 = vmatprep.subr.mxu0 0.0
        %939 = vmatpush1.msra.mxu0 0.0
        %940 = vmatprep.subr.mxu0 0.0
        %941 = vmatpush1.msra.mxu0 0.0
        %942 = vmatprep.subr.mxu0 0.0
        %943 = vmatpush1.msra.mxu0 0.0
        %944 = vmatprep.subr.mxu0 0.0
        %945 = vmatpush1.msra.mxu0 0.0
        %946 = vmatprep.subr.mxu0 0.0
        %947 = vmatpush1.msra.mxu0 0.0
        %948 = vmatprep.subr.mxu0 0.0
        %949 = vmatpush1.msra.mxu0 0.0
        %950 = vmatprep.subr.mxu0 0.0
        %951 = vmatpush1.msra.mxu0 0.0
        %952 = vmatprep.subr.mxu0 0.0
        %953 = vmatpush1.msra.mxu0 0.0
        %954 = vmatprep.subr.mxu0 0.0
        %955 = vmatpush1.msra.mxu0 0.0
        %956 = vmatprep.subr.mxu0 0.0
        %957 = vmatpush1.msra.mxu0 0.0
        %958 = vmatprep.subr.mxu0 0.0
        %959 = vmatpush1.msra.mxu0 0.0
        %960 = vmatprep.subr.mxu0 0.0
        %961 = vmatpush1.msra.mxu0 0.0
        %962 = vmatprep.subr.mxu0 0.0
        %963 = vmatpush1.msra.mxu0 0.0
        %964 = vmatprep.subr.mxu0 0.0
        %965 = vmatpush1.msra.mxu0 0.0
        %966 = vmatprep.subr.mxu0 0.0
        %967 = vmatpush1.msra.mxu0 0.0
        %968 = vmatprep.subr.mxu0 0.0
        %969 = vmatpush1.msra.mxu0 0.0
        %970 = vmatprep.subr.mxu0 0.0
        %971 = vmatpush1.msra.mxu0 0.0
        %972 = vmatprep.subr.mxu0 0.0
        %973 = vmatpush1.msra.mxu0 0.0
        %974 = vmatprep.subr.mxu0 0.0
        %975 = vmatpush1.msra.mxu0 0.0
        %976 = vmatprep.subr.mxu0 0.0
        %977 = vmatpush1.msra.mxu0 0.0
        %978 = vmatprep.subr.mxu0 0.0
        %979 = vmatpush1.msra.mxu0 0.0
        %980 = vmatprep.subr.mxu0 0.0
        %981 = vmatpush1.msra.mxu0 0.0
        %982 = vmatprep.mubr.f32.mxu0 0.0
        %983 = vmatmul.mubr.f32.gmra.mrb[0].mxu0 %v909
        %v984 = vpop.f32.mrb[0].mxu0
        %v985 = vadd.f32 %v906, %v984
        %v986 = vpop.f32.mrb[0].mxu0
        %v987 = vadd.f32 %v906, %v986
        %988 = vdwg.mxu0
        %v991 = vcombine.low %v985, %v987
        %v993 = vunpack.c.l.s4 1966171168
        %v994 = vunpack.c.0.s8 %v993
        %v995 = vlaneseq
        %v996 = vshrl.u32 %v995, 7
        %v997 = vsub.s32 %v994, %v996
        %v998 = vrot.slane %v991, %v997
        %v1000 = vunpack.c.l.s4 1966171168
        %v1001 = vunpack.c.0.s8 %v1000
        %v1002 = vlaneseq
        %v1003 = vshrl.u32 %v1002, 7
        %v1004 = vsub.s32 %v1001, %v1003
        %v1005 = vrot.slane %v998, %v1004
        %v1007 = vlaneseq
        %vm1008 = vcmp.ge.s32.totalorder %v1007, 0
        %vm1009 = vcmp.lt.s32.totalorder %v1007, 256
        %vm1010 = vmand %vm1008, %vm1009
        %1011 = vst.msk [vmem:[%s433] sm:$0x3] %vm1010, %v1005
        %s1012 = sand.u32 %s296, 1
        %s1013 = scalar_lea.sflag [#allocation5], %s1012
        %s1014 = sand.u32 %s296, 1
        %s1015 = smul.addr %s1014, 2
        %s1016 = scalar_lea.vmem [#allocation6], %s1015
        // Predicated region
        $region73: #{tpu_custom_call.1} parent=67 // pred_check
          %p1017 = pneg %p306
        $region74: #{tpu_custom_call.1} parent=67 // pred_check_branch
          %1019 = sbr.rel (%p1017) target = $region76
        $region75: #{tpu_custom_call.1} parent=67 // pred_region
          %s1020 = smul.u32 2, %s31
          %s1022 = ssub.s32 32, 32
          %1023 = vsyncadd %s1013, %s1022
          %s1024 = smul.addr %s1020, 16
          %s1025 = scalar_lea.hbm %s12, %s1024
          %s1027 = sshll.u32 %s1016, 4
          %s1028 = int_to_ptr.vmem [resolvable:$true] %s1027
          %1030 = dma.vmem_to_hbm [thread:$0]  %s1028, 32, %s1025, %s1013
        $region76: #{tpu_custom_call.1} parent=67 // pred_fallthru
          _
      $region68: #{tpu_custom_call.1} parent=5 // pred_fallthru
        _
      %p1031 = scmp.le.s32.totalorder 2, %s26
      // Predicated region
      $region77: #{tpu_custom_call.1} parent=5 // pred_check
        %p1032 = pneg %p1031
      $region78: #{tpu_custom_call.1} parent=5 // pred_check_branch
        %1034 = sbr.rel (%p1032) target = $region80
      $region79: #{tpu_custom_call.1} parent=5 // pred_region
        %s1035 = ssub.s32 %s26, 2
        // Predicated region
        $region81: #{tpu_custom_call.1} parent=79 // pred_check
          %p1036 = pneg %p312
        $region82: #{tpu_custom_call.1} parent=79 // pred_check_branch
          %1038 = sbr.rel (%p1036) target = $region84
        $region83: #{tpu_custom_call.1} parent=79 // pred_region
          %s1039 = sand.u32 %s297, 1
          %s1040 = scalar_lea.sflag [#allocation5], %s1039
          %s1041 = sand.u32 %s297, 1
          %s1042 = smul.addr %s1041, 2
          %s1043 = scalar_lea.vmem [#allocation6], %s1042
          %1044 = dma.done %s1040, 32
        $region84: #{tpu_custom_call.1} parent=79 // pred_fallthru
          _
      $region80: #{tpu_custom_call.1} parent=5 // pred_fallthru
        _
    $region6: #{tpu_custom_call.1} parent=1 // loop_footer
      %s30 = sadd.s32 1, %s26
    $region7: #{tpu_custom_call.1} parent=1 // loop_footer_branch
      %25 = sbr.rel target = $region3
    $region8: #{tpu_custom_call.1} parent=1 // loop_exit
      _
    %1045 = vsyncpa [#allocation4], 1
    %s1046 = scalar_lea.sflag [#allocation4], 1
    %1047 = vsyncpa %s1046, 1
    %1048 = vsyncpa [#allocation5], 1
    %s1049 = scalar_lea.sflag [#allocation5], 1
    %1050 = vsyncpa %s1049, 1

</llo_original>
